<compile_context>
chip_gen: v6e
topology: v6e:2x2x1
jax: 0.10.0
libtpu: 0.0.40
codegen_flags: <defaults>
</compile_context>

<pallas_src>
import functools
import math

import jax
import jax.numpy as jnp
from jax.experimental import pallas as pl
from jax.experimental.pallas import tpu as pltpu

_EPS = 1e-8


# --------------------------------------------------------------------------- helpers
def _hw_budget():
    """(target block bytes, vmem_limit cap) picked per TPU generation."""
    try:
        vmem = int(getattr(pltpu.get_tpu_info(), "vmem_capacity_bytes", 64 << 20))
    except Exception:  # conservative default if the query is unavailable
        vmem = 64 << 20
    if vmem >= (96 << 20):          # v5e / v6e: 128 MiB physical VMEM
        return 8 << 20, 96 << 20
    return 3 << 20, 44 << 20        # v7x-class: 64 MiB per TensorCore


def _vmem_limit(block_bytes: int, cap: int) -> int:
    # double-buffered in + out blocks plus ~8 block-sized in-kernel temporaries
    need = 12 * block_bytes
    return int(min(cap, max(32 << 20, need)))


def _choose_group(bc: int, bytes_per_img: int, align: int, target_bytes: int) -> int:
    """Images per grid step.

    Constraints / goals: g divides BC (no ragged last block), g % align == 0 so the
    block's sublane extent stays a multiple of 8 (g == BC is always legal since the
    block then equals the full array), prefer >= 8 grid steps for pipelining and
    dual-TensorCore sharding, then grow blocks toward `target_bytes`.
    """
    align = max(1, align)
    cands = {g for g in range(1, bc + 1) if bc % g == 0 and g % align == 0}
    cands.add(bc)
    cands = sorted(cands)
    for want_steps in (8, 4, 2, 1):
        fits = [g for g in cands
                if g * bytes_per_img <= target_bytes and bc // g >= want_steps]
        if fits:
            return max(fits)
    return cands[0]


# --------------------------------------------------------------------------- kernels
def _sobel_stacked_kernel(x_ref, o_ref, *, img_h: int):
    """Separable Sobel on a (R, W) block of row-stacked images (R = G*img_h).

    Zero-pad halo emulated with pltpu.roll + boundary masks; the row masks also stop
    adjacent images inside the block from bleeding into each other.
    """
    x = x_ref[...]                                                   # (R, W) f32
    R, W = x.shape
    row = jax.lax.broadcasted_iota(jnp.int32, (R, 1), 0) % img_h     # (R, 1)
    col = jax.lax.broadcasted_iota(jnp.int32, (1, W), 1)             # (1, W)
    has_up = row != 0
    has_dn = row != img_h - 1
    has_lf = col != 0
    has_rt = col != W - 1

    x2 = x + x

    # vertical [1,2,1] triple -> sobel_x, accumulate sx^2 first
    v = (jnp.where(has_up, pltpu.roll(x, 1, 0), 0.0) + x2
         + jnp.where(has_dn, pltpu.roll(x, R - 1, 0), 0.0))
    sx = (jnp.where(has_rt, pltpu.roll(v, W - 1, 1), 0.0)
          - jnp.where(has_lf, pltpu.roll(v, 1, 1), 0.0))
    acc = sx * sx

    # horizontal [1,2,1] triple -> sobel_y
    h = (jnp.where(has_lf, pltpu.roll(x, 1, 1), 0.0) + x2
         + jnp.where(has_rt, pltpu.roll(x, W - 1, 1), 0.0))
    sy = (jnp.where(has_up, pltpu.roll(h, 1, 0), 0.0)
          - jnp.where(has_dn, pltpu.roll(h, R - 1, 0), 0.0))
    acc = acc + sy * sy

    o_ref[...] = jnp.sqrt(acc + _EPS)


def _sobel_packed_kernel(x_ref, o_ref, *, img_w: int, rows_per_img: int):
    """Separable Sobel on a (R, 128) block where each 128-lane row holds 128/img_w
    consecutive image rows (flat row-major pixel order).  rows_per_img = H*W/128.

    Up/down neighbours live img_w lanes away; when they fall off the packed row the
    value is taken from the adjacent packed row via one extra sublane roll.  Image
    boundaries are handled by masks built from a (R,1) row iota and a (1,128) lane iota.
    """
    x = x_ref[...]                                                   # (R, 128) f32
    R, L = x.shape
    w = img_w
    row = jax.lax.broadcasted_iota(jnp.int32, (R, 1), 0) % rows_per_img   # (R, 1)
    lane = jax.lax.broadcasted_iota(jnp.int32, (1, L), 1)                 # (1, L)
    lmod = lane % w
    has_lf = lmod != 0                                               # (1, L)
    has_rt = lmod != w - 1                                           # (1, L)
    has_up = jnp.logical_or(row != 0, lane >= w)                     # (R, L)
    has_dn = jnp.logical_or(row != rows_per_img - 1, lane < L - w)   # (R, L)

    x2 = x + x

    # vertical [1,2,1] triple -> sobel_x, accumulate sx^2 first
    a = pltpu.roll(x, w, 1)                 # candidate up-neighbour (same packed row)
    x_up = jnp.where(has_up, jnp.where(lane >= w, a, pltpu.roll(a, 1, 0)), 0.0)
    b = pltpu.roll(x, L - w, 1)             # candidate down-neighbour (same packed row)
    x_dn = jnp.where(has_dn, jnp.where(lane < L - w, b, pltpu.roll(b, R - 1, 0)), 0.0)
    v = x_up + x2 + x_dn
    sx = (jnp.where(has_rt, pltpu.roll(v, L - 1, 1), 0.0)
          - jnp.where(has_lf, pltpu.roll(v, 1, 1), 0.0))
    acc = sx * sx

    # horizontal [1,2,1] triple -> sobel_y
    h = (jnp.where(has_lf, pltpu.roll(x, 1, 1), 0.0) + x2
         + jnp.where(has_rt, pltpu.roll(x, L - 1, 1), 0.0))
    ha = pltpu.roll(h, w, 1)
    h_up = jnp.where(has_up, jnp.where(lane >= w, ha, pltpu.roll(ha, 1, 0)), 0.0)
    hb = pltpu.roll(h, L - w, 1)
    h_dn = jnp.where(has_dn, jnp.where(lane < L - w, hb, pltpu.roll(hb, R - 1, 0)), 0.0)
    sy = h_up - h_dn
    acc = acc + sy * sy

    o_ref[...] = jnp.sqrt(acc + _EPS)


# --------------------------------------------------------------------------- wrapper
def sobelxy(x: jax.Array) -> jax.Array:
    """x: (B, C, H, W) -> (B, C, H, W); sqrt(sobel_x^2 + sobel_y^2 + 1e-8) per channel."""
    B, C, H, W = x.shape
    if x.dtype != jnp.float32:
        x = x.astype(jnp.float32)
    BC = B * C
    npix = BC * H * W
    target_bytes, vmem_cap = _hw_budget()
    cost = pl.CostEstimate(flops=14 * npix, transcendentals=npix,
                           bytes_accessed=8 * npix)

    # Lane-packed path: W divides 128 and whole image rows tile each 128-lane vector
    # row exactly.  Pure reshape (contiguous), no host-side pad or transpose.
    use_packed = (W < 128) and (128 % W == 0) and (H % (128 // W) == 0)

    if use_packed:
        rpi = (H * W) // 128                              # packed rows per image
        align = 8 // math.gcd(rpi, 8)                     # g*rpi must be 8-aligned
        blk_img_bytes = rpi * 128 * 4
        g = _choose_group(BC, blk_img_bytes, align, target_bytes)
        rows = g * rpi
        out = pl.pallas_call(
            functools.partial(_sobel_packed_kernel, img_w=W, rows_per_img=rpi),
            out_shape=jax.ShapeDtypeStruct((BC * rpi, 128), jnp.float32),
            grid_spec=pltpu.PrefetchScalarGridSpec(
                num_scalar_prefetch=0,
                grid=(BC // g,),
                in_specs=[pl.BlockSpec((rows, 128), lambda i: (i, 0))],
                out_specs=pl.BlockSpec((rows, 128), lambda i: (i, 0)),
            ),
            compiler_params=pltpu.CompilerParams(
                dimension_semantics=("parallel",),
                vmem_limit_bytes=_vmem_limit(rows * 128 * 4, vmem_cap),
            ),
            cost_estimate=cost,
        )(x.reshape(BC * rpi, 128))
        return out.reshape(B, C, H, W)

    # Row-stacked path: fold (B, C, H) into the sublane axis; lane dim = W (full extent).
    # Lane-dense whenever W % 128 == 0; generic (correct) fallback otherwise.
    w_pad = -(-W // 128) * 128                            # VMEM lane padding of W
    align = 8 // math.gcd(H, 8)                           # g*H must be 8-aligned
    g = _choose_group(BC, H * w_pad * 4, align, target_bytes)
    rows = g * H
    out = pl.pallas_call(
        functools.partial(_sobel_stacked_kernel, img_h=H),
        out_shape=jax.ShapeDtypeStruct((BC * H, W), jnp.float32),
        grid_spec=pltpu.PrefetchScalarGridSpec(
            num_scalar_prefetch=0,
            grid=(BC // g,),
            in_specs=[pl.BlockSpec((rows, W), lambda i: (i, 0))],
            out_specs=pl.BlockSpec((rows, W), lambda i: (i, 0)),
        ),
        compiler_params=pltpu.CompilerParams(
            dimension_semantics=("parallel",),
            vmem_limit_bytes=_vmem_limit(rows * w_pad * 4, vmem_cap),
        ),
        cost_estimate=cost,
    )(x.reshape(BC * H, W))
    return out.reshape(B, C, H, W)


# ----------------------------- verification ---------------------------------
_KX = ((-1.0, 0.0, 1.0), (-2.0, 0.0, 2.0), (-1.0, 0.0, 1.0))
_KY = ((1.0, 2.0, 1.0), (0.0, 0.0, 0.0), (-1.0, -2.0, -1.0))


def _reference(x):
    kx = jnp.array(_KX, jnp.float32)
    ky = jnp.array(_KY, jnp.float32)
    B, C, H, W = x.shape
    xp = jnp.pad(x, ((0, 0), (0, 0), (1, 1), (1, 1)))
    sx = jnp.zeros_like(x)
    sy = jnp.zeros_like(x)
    for di in range(3):
        for dj in range(3):
            patch = xp[:, :, di:di + H, dj:dj + W]
            sx = sx + kx[di, dj] * patch
            sy = sy + ky[di, dj] * patch
    return jnp.sqrt(sx * sx + sy * sy + _EPS)


if __name__ == "__main__":
    key = jax.random.PRNGKey(0)
    B, C, H, W = 2, 4, 16, 16
    x = jax.random.normal(key, (B, C, H, W), dtype=jnp.float32)

    y = sobelxy(x)                                  # lane-packed path (W=16 | 128)
    jax.block_until_ready(y)
    y_ref = _reference(x)
    assert y.shape == (B, C, H, W)
    assert jnp.allclose(y, y_ref, atol=1e-5, rtol=1e-5)

    # also exercise the row-stacked (lane-dense, W % 128 == 0) path
    x2 = jax.random.normal(jax.random.PRNGKey(1), (2, 2, 8, 128), dtype=jnp.float32)
    y2 = sobelxy(x2)
    jax.block_until_ready(y2)
    assert jnp.allclose(y2, _reference(x2), atol=1e-5, rtol=1e-5)

    print("KERNEL_OK")
</pallas_src>

<mosaic_0001>
module attributes {stable_mosaic.version = 11 : i64} {
  func.func @_sobel_packed_kernel(%arg0: i32, %arg1: memref<8x128xf32, #tpu.memory_space<vmem>>, %arg2: memref<8x128xf32, #tpu.memory_space<vmem>>) attributes {dimension_semantics = [#tpu.dimension_semantics<parallel>], iteration_bounds = array<i64: 2>, scalar_prefetch = 0 : i64, scratch_operands = 0 : i64, tpu.core_type = #tpu.core_type<tc>, window_params = [{transform_indices = @transform_0, window_bounds = array<i64: 8, 128>}, {transform_indices = @transform_1, window_bounds = array<i64: 8, 128>}]} {
    %c0 = arith.constant 0 : index
    %c0_0 = arith.constant 0 : index
    %0 = vector.load %arg1[%c0, %c0_0] : memref<8x128xf32, #tpu.memory_space<vmem>>, vector<8x128xf32>
    %1 = tpu.iota {dimensions = array<i32: 0>} : vector<8x1xi32>
    %c2_i32 = arith.constant 2 : i32
    %c0_i32 = arith.constant 0 : i32
    %2 = arith.cmpi eq, %c2_i32, %c0_i32 : i32
    %c1_i32 = arith.constant 1 : i32
    %3 = arith.select %2, %c1_i32, %c2_i32 : i32
    %4 = vector.broadcast %3 : i32 to vector<8x1xi32>
    %5 = arith.remsi %1, %4 : vector<8x1xi32>
    %c0_i32_1 = arith.constant 0 : i32
    %6 = vector.broadcast %c0_i32_1 : i32 to vector<8x1xi32>
    %7 = arith.cmpi ne, %5, %6 : vector<8x1xi32>
    %c0_i32_2 = arith.constant 0 : i32
    %8 = vector.broadcast %c0_i32_2 : i32 to vector<8x1xi32>
    %9 = arith.cmpi slt, %5, %8 : vector<8x1xi32>
    %c0_i32_3 = arith.constant 0 : i32
    %10 = arith.cmpi slt, %3, %c0_i32_3 : i32
    %11 = vector.broadcast %10 : i1 to vector<8x1xi1>
    %12 = vector.broadcast %11 : vector<8x1xi1> to vector<8x1xi1>
    %13 = arith.xori %9, %12 : vector<8x1xi1>
    %14 = arith.andi %13, %7 : vector<8x1xi1>
    %15 = vector.broadcast %3 : i32 to vector<8x1xi32>
    %16 = arith.addi %5, %15 : vector<8x1xi32>
    %17 = arith.select %14, %16, %5 : vector<8x1xi1>, vector<8x1xi32>
    %18 = tpu.iota {dimensions = array<i32: 1>} : vector<1x128xi32>
    %c16_i32 = arith.constant 16 : i32
    %c0_i32_4 = arith.constant 0 : i32
    %19 = arith.cmpi eq, %c16_i32, %c0_i32_4 : i32
    %c1_i32_5 = arith.constant 1 : i32
    %20 = arith.select %19, %c1_i32_5, %c16_i32 : i32
    %21 = vector.broadcast %20 : i32 to vector<1x128xi32>
    %22 = arith.remsi %18, %21 : vector<1x128xi32>
    %c0_i32_6 = arith.constant 0 : i32
    %23 = vector.broadcast %c0_i32_6 : i32 to vector<1x128xi32>
    %24 = arith.cmpi ne, %22, %23 : vector<1x128xi32>
    %c0_i32_7 = arith.constant 0 : i32
    %25 = vector.broadcast %c0_i32_7 : i32 to vector<1x128xi32>
    %26 = arith.cmpi slt, %22, %25 : vector<1x128xi32>
    %c0_i32_8 = arith.constant 0 : i32
    %27 = arith.cmpi slt, %20, %c0_i32_8 : i32
    %28 = vector.broadcast %27 : i1 to vector<1x128xi1>
    %29 = vector.broadcast %28 : vector<1x128xi1> to vector<1x128xi1>
    %30 = arith.xori %26, %29 : vector<1x128xi1>
    %31 = arith.andi %30, %24 : vector<1x128xi1>
    %32 = vector.broadcast %20 : i32 to vector<1x128xi32>
    %33 = arith.addi %22, %32 : vector<1x128xi32>
    %34 = arith.select %31, %33, %22 : vector<1x128xi1>, vector<1x128xi32>
    %c0_i32_9 = arith.constant 0 : i32
    %35 = vector.broadcast %c0_i32_9 : i32 to vector<1x128xi32>
    %36 = arith.cmpi ne, %34, %35 : vector<1x128xi32>
    %c15_i32 = arith.constant 15 : i32
    %37 = vector.broadcast %c15_i32 : i32 to vector<1x128xi32>
    %38 = arith.cmpi ne, %34, %37 : vector<1x128xi32>
    %c0_i32_10 = arith.constant 0 : i32
    %39 = vector.broadcast %c0_i32_10 : i32 to vector<8x1xi32>
    %40 = arith.cmpi ne, %17, %39 : vector<8x1xi32>
    %c16_i32_11 = arith.constant 16 : i32
    %41 = vector.broadcast %c16_i32_11 : i32 to vector<1x128xi32>
    %42 = arith.cmpi sge, %18, %41 : vector<1x128xi32>
    %43 = vector.broadcast %40 : vector<8x1xi1> to vector<8x128xi1>
    %44 = vector.broadcast %42 : vector<1x128xi1> to vector<8x128xi1>
    %45 = arith.ori %43, %44 : vector<8x128xi1>
    %c1_i32_12 = arith.constant 1 : i32
    %46 = vector.broadcast %c1_i32_12 : i32 to vector<8x1xi32>
    %47 = arith.cmpi ne, %17, %46 : vector<8x1xi32>
    %c112_i32 = arith.constant 112 : i32
    %48 = vector.broadcast %c112_i32 : i32 to vector<1x128xi32>
    %49 = arith.cmpi slt, %18, %48 : vector<1x128xi32>
    %50 = vector.broadcast %47 : vector<8x1xi1> to vector<8x128xi1>
    %51 = vector.broadcast %49 : vector<1x128xi1> to vector<8x128xi1>
    %52 = arith.ori %50, %51 : vector<8x128xi1>
    %53 = arith.addf %0, %0 : vector<8x128xf32>
    %c16_i32_13 = arith.constant 16 : i32
    %54 = tpu.dynamic_rotate %0 by %c16_i32_13 dim 1 : vector<8x128xf32>, i32 -> vector<8x128xf32>
    %c16_i32_14 = arith.constant 16 : i32
    %55 = vector.broadcast %c16_i32_14 : i32 to vector<1x128xi32>
    %56 = arith.cmpi sge, %18, %55 : vector<1x128xi32>
    %c1_i32_15 = arith.constant 1 : i32
    %57 = tpu.dynamic_rotate %54 by %c1_i32_15 dim 0 : vector<8x128xf32>, i32 -> vector<8x128xf32>
    %58 = vector.shape_cast %56 : vector<1x128xi1> to vector<1x128xi1>
    %59 = vector.broadcast %58 : vector<1x128xi1> to vector<8x128xi1>
    %60 = arith.select %59, %54, %57 : vector<8x128xi1>, vector<8x128xf32>
    %cst = arith.constant 0.000000e+00 : f32
    %61 = vector.broadcast %cst : f32 to vector<8x128xf32>
    %62 = arith.select %45, %60, %61 : vector<8x128xi1>, vector<8x128xf32>
    %c112_i32_16 = arith.constant 112 : i32
    %63 = tpu.dynamic_rotate %0 by %c112_i32_16 dim 1 : vector<8x128xf32>, i32 -> vector<8x128xf32>
    %c112_i32_17 = arith.constant 112 : i32
    %64 = vector.broadcast %c112_i32_17 : i32 to vector<1x128xi32>
    %65 = arith.cmpi slt, %18, %64 : vector<1x128xi32>
    %c7_i32 = arith.constant 7 : i32
    %66 = tpu.dynamic_rotate %63 by %c7_i32 dim 0 : vector<8x128xf32>, i32 -> vector<8x128xf32>
    %67 = vector.shape_cast %65 : vector<1x128xi1> to vector<1x128xi1>
    %68 = vector.broadcast %67 : vector<1x128xi1> to vector<8x128xi1>
    %69 = arith.select %68, %63, %66 : vector<8x128xi1>, vector<8x128xf32>
    %cst_18 = arith.constant 0.000000e+00 : f32
    %70 = vector.broadcast %cst_18 : f32 to vector<8x128xf32>
    %71 = arith.select %52, %69, %70 : vector<8x128xi1>, vector<8x128xf32>
    %72 = arith.addf %62, %53 : vector<8x128xf32>
    %73 = arith.addf %72, %71 : vector<8x128xf32>
    %c127_i32 = arith.constant 127 : i32
    %74 = tpu.dynamic_rotate %73 by %c127_i32 dim 1 : vector<8x128xf32>, i32 -> vector<8x128xf32>
    %cst_19 = arith.constant 0.000000e+00 : f32
    %75 = vector.shape_cast %38 : vector<1x128xi1> to vector<1x128xi1>
    %76 = vector.broadcast %75 : vector<1x128xi1> to vector<8x128xi1>
    %77 = vector.broadcast %cst_19 : f32 to vector<8x128xf32>
    %78 = arith.select %76, %74, %77 : vector<8x128xi1>, vector<8x128xf32>
    %c1_i32_20 = arith.constant 1 : i32
    %79 = tpu.dynamic_rotate %73 by %c1_i32_20 dim 1 : vector<8x128xf32>, i32 -> vector<8x128xf32>
    %cst_21 = arith.constant 0.000000e+00 : f32
    %80 = vector.shape_cast %36 : vector<1x128xi1> to vector<1x128xi1>
    %81 = vector.broadcast %80 : vector<1x128xi1> to vector<8x128xi1>
    %82 = vector.broadcast %cst_21 : f32 to vector<8x128xf32>
    %83 = arith.select %81, %79, %82 : vector<8x128xi1>, vector<8x128xf32>
    %84 = arith.subf %78, %83 : vector<8x128xf32>
    %85 = arith.mulf %84, %84 : vector<8x128xf32>
    %c1_i32_22 = arith.constant 1 : i32
    %86 = tpu.dynamic_rotate %0 by %c1_i32_22 dim 1 : vector<8x128xf32>, i32 -> vector<8x128xf32>
    %cst_23 = arith.constant 0.000000e+00 : f32
    %87 = vector.shape_cast %36 : vector<1x128xi1> to vector<1x128xi1>
    %88 = vector.broadcast %87 : vector<1x128xi1> to vector<8x128xi1>
    %89 = vector.broadcast %cst_23 : f32 to vector<8x128xf32>
    %90 = arith.select %88, %86, %89 : vector<8x128xi1>, vector<8x128xf32>
    %91 = arith.addf %90, %53 : vector<8x128xf32>
    %c127_i32_24 = arith.constant 127 : i32
    %92 = tpu.dynamic_rotate %0 by %c127_i32_24 dim 1 : vector<8x128xf32>, i32 -> vector<8x128xf32>
    %cst_25 = arith.constant 0.000000e+00 : f32
    %93 = vector.shape_cast %38 : vector<1x128xi1> to vector<1x128xi1>
    %94 = vector.broadcast %93 : vector<1x128xi1> to vector<8x128xi1>
    %95 = vector.broadcast %cst_25 : f32 to vector<8x128xf32>
    %96 = arith.select %94, %92, %95 : vector<8x128xi1>, vector<8x128xf32>
    %97 = arith.addf %91, %96 : vector<8x128xf32>
    %c16_i32_26 = arith.constant 16 : i32
    %98 = tpu.dynamic_rotate %97 by %c16_i32_26 dim 1 : vector<8x128xf32>, i32 -> vector<8x128xf32>
    %c16_i32_27 = arith.constant 16 : i32
    %99 = vector.broadcast %c16_i32_27 : i32 to vector<1x128xi32>
    %100 = arith.cmpi sge, %18, %99 : vector<1x128xi32>
    %c1_i32_28 = arith.constant 1 : i32
    %101 = tpu.dynamic_rotate %98 by %c1_i32_28 dim 0 : vector<8x128xf32>, i32 -> vector<8x128xf32>
    %102 = vector.shape_cast %100 : vector<1x128xi1> to vector<1x128xi1>
    %103 = vector.broadcast %102 : vector<1x128xi1> to vector<8x128xi1>
    %104 = arith.select %103, %98, %101 : vector<8x128xi1>, vector<8x128xf32>
    %cst_29 = arith.constant 0.000000e+00 : f32
    %105 = vector.broadcast %cst_29 : f32 to vector<8x128xf32>
    %106 = arith.select %45, %104, %105 : vector<8x128xi1>, vector<8x128xf32>
    %c112_i32_30 = arith.constant 112 : i32
    %107 = tpu.dynamic_rotate %97 by %c112_i32_30 dim 1 : vector<8x128xf32>, i32 -> vector<8x128xf32>
    %c112_i32_31 = arith.constant 112 : i32
    %108 = vector.broadcast %c112_i32_31 : i32 to vector<1x128xi32>
    %109 = arith.cmpi slt, %18, %108 : vector<1x128xi32>
    %c7_i32_32 = arith.constant 7 : i32
    %110 = tpu.dynamic_rotate %107 by %c7_i32_32 dim 0 : vector<8x128xf32>, i32 -> vector<8x128xf32>
    %111 = vector.shape_cast %109 : vector<1x128xi1> to vector<1x128xi1>
    %112 = vector.broadcast %111 : vector<1x128xi1> to vector<8x128xi1>
    %113 = arith.select %112, %107, %110 : vector<8x128xi1>, vector<8x128xf32>
    %cst_33 = arith.constant 0.000000e+00 : f32
    %114 = vector.broadcast %cst_33 : f32 to vector<8x128xf32>
    %115 = arith.select %52, %113, %114 : vector<8x128xi1>, vector<8x128xf32>
    %116 = arith.subf %106, %115 : vector<8x128xf32>
    %117 = arith.mulf %116, %116 : vector<8x128xf32>
    %118 = arith.addf %85, %117 : vector<8x128xf32>
    %cst_34 = arith.constant 9.99999993E-9 : f32
    %119 = vector.broadcast %cst_34 : f32 to vector<8x128xf32>
    %120 = arith.addf %118, %119 : vector<8x128xf32>
    %121 = math.sqrt %120 : vector<8x128xf32>
    %c0_35 = arith.constant 0 : index
    %c0_36 = arith.constant 0 : index
    %122 = vector.load %arg2[%c0_35, %c0_36] : memref<8x128xf32, #tpu.memory_space<vmem>>, vector<8x128xf32>
    tpu.vector_store %arg2[%c0_35, %c0_36], %121 {strides = array<i32>} : memref<8x128xf32, #tpu.memory_space<vmem>>, vector<8x128xf32>,
    return
  }
  func.func @transform_0(%arg0: i32) -> (i32, i32) {
    %c0_i32 = arith.constant 0 : i32
    %c0_i32_0 = arith.constant 0 : i32
    return %arg0, %c0_i32 : i32, i32
  }
  func.func @transform_1(%arg0: i32) -> (i32, i32) {
    %c0_i32 = arith.constant 0 : i32
    %c0_i32_0 = arith.constant 0 : i32
    return %arg0, %c0_i32 : i32, i32
  }
}

</mosaic_0001>

<llo_original>
// kernel: tpu_custom_call.1
$region0: #{tpu_custom_call.1}
  #allocation0 [shape = 'u32[]', space=smem, size = 0x4, offset = 0x4, fixed_abs, tag = 'smem constant byte address 0x4 - core index']
  #allocation1 [shape = 'u32[144,128]{1,0:T(1,128)}', space=vmem, size = 0x12000, scoped, tag = 'internal scratch']
  %s0 = inlined_call_operand.hbm [shape: f32[16,128], index: 0, kind: input, shape index: {}]
  %s1 = inlined_call_operand.hbm [shape: f32[16,128], index: 1, kind: output, shape index: {}]
  %s2 = sld [smem:[#allocation0]]
  $region41: #{tpu_custom_call.1} parent=0
    _
  %s4 = ssub.s32 1, %s2
  %s5 = scalar_select 0, %s4, %s2
  $region1: #{tpu_custom_call.1} parent=0
    #allocation2 [shape = 'u8[8192]{0}', space=vmem, size = 0x2000, scoped, tag = 'input window, operand 0']
    #allocation3 [shape = 's32[2]{0}', space=sflag, size = 0x8, scoped, tag = 'scoped memory for tpu_custom_call.1']
    #allocation4 [shape = 's32[2]{0}', space=sflag, size = 0x8, scoped, tag = 'scoped memory for tpu_custom_call.1']
    #allocation5 [shape = 'u8[8192]{0}', space=vmem, size = 0x2000, scoped, tag = 'output window, operand 0']
    %6 = vsyncpa [#allocation3], 0
    %s7 = scalar_lea.sflag [#allocation3], 1
    %8 = vsyncpa %s7, 0
    %9 = vsyncpa [#allocation4], 0
    %s10 = scalar_lea.sflag [#allocation4], 1
    %11 = vsyncpa %s10, 0
    loop: start=0, step=1, limit=4
    $region2: #{tpu_custom_call.1} parent=1 // loop_pre_header
      _
    $region3: #{tpu_custom_call.1} parent=1 // loop_header
      %s13 = sphi 0, %s17
      %p14 = scmp.ge.s32.totalorder %s13, 4
      %s23 = sphi 0, %s25
      %s26 = sphi 0, %s23
      %s27 = sphi 0, %s26
      %s43 = sphi 0, %s27
      %s49 = sphi 0, %s51
      %s52 = sphi 0, %s49
      %s53 = sphi 0, %s52
      %s69 = sphi 0, %s53
    $region4: #{tpu_custom_call.1} parent=1 // loop_header_branch
      %16 = sbr.rel (%p14) target = $region8
    $region5: #{tpu_custom_call.1} parent=1 // loop_body
      %s18 = ssub.s32 %s13, 1
      %s19 = ssub.s32 %s13, 2
      %s20 = sadd.s32 %s13, 1
      %s21 = ssub.s32 %s13, %s20
      %p22 = scmp.eq.s32.totalorder %s21, 0
      %s24 = sadd.s32 %s23, 1
      %s25 = scalar_select %p22, %s23, %s24
      %p28 = pneg %p22
      %p29 = scmp.eq.s32.totalorder %s13, 1
      %p30 = por %p28, %p29
      %p31 = scmp.ne.s32.totalorder %s23, %s26
      %p32 = scmp.eq.s32.totalorder %s13, 0
      %p33 = por %p31, %p32
      %p34 = scmp.ne.s32.totalorder %s23, %s26
      %p35 = scmp.eq.s32.totalorder %s18, 1
      %p36 = por %p34, %p35
      %p37 = scmp.ne.s32.totalorder %s26, %s27
      %p38 = scmp.eq.s32.totalorder %s18, 0
      %p39 = por %p37, %p38
      %p40 = scmp.ne.s32.totalorder %s26, %s27
      %p41 = scmp.eq.s32.totalorder %s19, 1
      %p42 = por %p40, %p41
      %p44 = scmp.ne.s32.totalorder %s27, %s43
      %p45 = scmp.eq.s32.totalorder %s19, 0
      %p46 = por %p44, %p45
      %s47 = ssub.s32 %s13, %s20
      %p48 = scmp.eq.s32.totalorder %s47, 0
      %s50 = sadd.s32 %s49, 1
      %s51 = scalar_select %p48, %s49, %s50
      %p54 = pneg %p48
      %p55 = scmp.eq.s32.totalorder %s13, 1
      %p56 = por %p54, %p55
      %p57 = scmp.ne.s32.totalorder %s49, %s52
      %p58 = scmp.eq.s32.totalorder %s13, 0
      %p59 = por %p57, %p58
      %p60 = scmp.ne.s32.totalorder %s49, %s52
      %p61 = scmp.eq.s32.totalorder %s18, 1
      %p62 = por %p60, %p61
      %p63 = scmp.ne.s32.totalorder %s52, %s53
      %p64 = scmp.eq.s32.totalorder %s18, 0
      %p65 = por %p63, %p64
      %p66 = scmp.ne.s32.totalorder %s52, %s53
      %p67 = scmp.eq.s32.totalorder %s19, 1
      %p68 = por %p66, %p67
      %p70 = scmp.ne.s32.totalorder %s53, %s69
      %p71 = scmp.eq.s32.totalorder %s19, 0
      %p72 = por %p70, %p71
      %p73 = scmp.le.s32.totalorder 1, %s13
      %p74 = scmp.lt.s32.totalorder %s13, 3
      %p75 = pnand %p73, %p74
      %p76 = pneg %p75
      // Predicated region
      $region9: #{tpu_custom_call.1} parent=5 // pred_check
        _
      $region10: #{tpu_custom_call.1} parent=5 // pred_check_branch
        %78 = sbr.rel (%p75) target = $region12
      $region11: #{tpu_custom_call.1} parent=5 // pred_region
        %s79 = ssub.s32 %s13, 1
      $region12: #{tpu_custom_call.1} parent=5 // pred_fallthru
        _
      %p80 = scmp.lt.s32.totalorder %s13, 2
      // Predicated region
      $region13: #{tpu_custom_call.1} parent=5 // pred_check
        %p81 = pneg %p80
      $region14: #{tpu_custom_call.1} parent=5 // pred_check_branch
        %83 = sbr.rel (%p81) target = $region16
      $region15: #{tpu_custom_call.1} parent=5 // pred_region
        // Predicated region
        $region17: #{tpu_custom_call.1} parent=15 // pred_check
          %p84 = pneg %p33
        $region18: #{tpu_custom_call.1} parent=15 // pred_check_branch
          %86 = sbr.rel (%p84) target = $region20
        $region19: #{tpu_custom_call.1} parent=15 // pred_region
          %s87 = sand.u32 %s23, 1
          %s88 = scalar_lea.sflag [#allocation3], %s87
          %s89 = sand.u32 %s23, 1
          %s90 = smul.addr %s89, 8
          %s91 = scalar_lea.vmem [#allocation2], %s90
          %s93 = ssub.s32 128, 128
          %94 = vsyncadd %s88, %s93
          %s95 = smul.addr %s13, 128
          %s96 = scalar_lea.hbm %s0, %s95
          %s98 = sshll.u32 %s91, 4
          %s99 = int_to_ptr.vmem [resolvable:$true] %s98
          %101 = dma.hbm_to_vmem [thread:$0]  %s96, 128, %s99, %s88
        $region20: #{tpu_custom_call.1} parent=15 // pred_fallthru
          _
      $region16: #{tpu_custom_call.1} parent=5 // pred_fallthru
        _
      %p102 = scmp.le.s32.totalorder 1, %s13
      %p103 = scmp.lt.s32.totalorder %s13, 3
      %p104 = pnand %p102, %p103
      %p105 = pneg %p104
      // Predicated region
      $region21: #{tpu_custom_call.1} parent=5 // pred_check
        _
      $region22: #{tpu_custom_call.1} parent=5 // pred_check_branch
        %107 = sbr.rel (%p104) target = $region24
      $region23: #{tpu_custom_call.1} parent=5 // pred_region
        %s108 = ssub.s32 %s13, 1
        %s109 = sand.u32 %s26, 1
        %s110 = scalar_lea.sflag [#allocation3], %s109
        %s111 = sand.u32 %s26, 1
        %s112 = smul.addr %s111, 8
        %s113 = scalar_lea.vmem [#allocation2], %s112
        // Predicated region
        $region25: #{tpu_custom_call.1} parent=23 // pred_check
          %p114 = pneg %p39
        $region26: #{tpu_custom_call.1} parent=23 // pred_check_branch
          %116 = sbr.rel (%p114) target = $region28
        $region27: #{tpu_custom_call.1} parent=23 // pred_region
          %117 = dma.done %s110, 128
        $region28: #{tpu_custom_call.1} parent=23 // pred_fallthru
          _
        %s118 = sand.u32 %s26, 1
        %s119 = scalar_lea.sflag [#allocation3], %s118
        %s120 = sand.u32 %s26, 1
        %s121 = smul.addr %s120, 8
        %s122 = scalar_lea.vmem [#allocation2], %s121
        %p123 = pneg %p39
        %p124 = pneg %p36
        %p125 = pneg %p65
        %p126 = pneg %p62
        %s127 = sand.u32 %s52, 1
        %s128 = scalar_lea.sflag [#allocation4], %s127
        %s129 = sand.u32 %s52, 1
        %s130 = smul.addr %s129, 8
        %s131 = scalar_lea.vmem [#allocation5], %s130
        %v132 = vld [vmem:[%s113] sm:$0xff]
        %v133 = vlaneseq
        %v134 = vshrl.u32 %v133, 7
        %vm135 = vcmp.lt.s32.totalorder %v134, 0
        %v136 = vsub.s32 0, %v134
        %v137 = vsel %vm135, %v136, %v134
        %v138 = vshrl.u32 %v137, 1
        %v139 = vand.u32 %v137, 1
        %v140 = vsub.s32 0, %v139
        %v141 = vsel %vm135, %v140, %v139
        %vm142 = vcmp.ne.s32.totalorder %v141, 0
        %vm143 = vcmp.lt.s32.totalorder %v141, 0
        %vm144 = vmand %vm143, %vm142
        %v145 = vadd.s32 %v141, 2
        %v146 = vsel %vm144, %v145, %v141
        %v147 = vlaneseq
        %v148 = vand.u32 %v147, 127
        %vm149 = vcmp.lt.s32.totalorder %v148, 0
        %v150 = vsub.s32 0, %v148
        %v151 = vsel %vm149, %v150, %v148
        %v152 = vshrl.u32 %v151, 4
        %v153 = vand.u32 %v151, 15
        %v154 = vsub.s32 0, %v153
        %v155 = vsel %vm149, %v154, %v153
        %vm156 = vcmp.ne.s32.totalorder %v155, 0
        %vm157 = vcmp.lt.s32.totalorder %v155, 0
        %vm158 = vmand %vm157, %vm156
        %v159 = vadd.s32 %v155, 16
        %v160 = vsel %vm158, %v159, %v155
        %vm161 = vcmp.ne.s32.totalorder %v160, 0
        %vm162 = vcmp.ne.s32.totalorder %v160, 15
        %vm163 = vcmp.ne.s32.totalorder %v146, 0
        %vm164 = vcmp.ge.s32.totalorder %v148, 16
        %v165 = vsel %vm163, 1, 0
        %vm166 = vcmp.eq.s32.totalorder %v165, 1
        %v167 = vsel %vm164, 1, 0
        %vm168 = vcmp.eq.s32.totalorder %v167, 1
        %vm169 = vmor %vm166, %vm168
        %vm170 = vcmp.ne.s32.totalorder %v146, 1
        %vm171 = vcmp.lt.s32.totalorder %v148, 112
        %v172 = vsel %vm170, 1, 0
        %vm173 = vcmp.eq.s32.totalorder %v172, 1
        %v174 = vsel %vm171, 1, 0
        %vm175 = vcmp.eq.s32.totalorder %v174, 1
        %vm176 = vmor %vm173, %vm175
        %v177 = vadd.f32 %v132, %v132
        %178 = vrot.lane.b32.xlu0 %v132, 16
        %v179 = vpop.permute.xlu0 %178
        %v180 = vrot.slane %v179, 7
        %v181 = vsel %vm168, %v179, %v180
        %v182 = vsel %vm169, %v181, 0.0
        %183 = vrot.lane.b32.xlu0 %v132, 112
        %v184 = vpop.permute.xlu0 %183
        %v185 = vrot.slane %v184, 1
        %v186 = vsel %vm175, %v184, %v185
        %v187 = vsel %vm176, %v186, 0.0
        %v188 = vadd.f32 %v182, %v177
        %v189 = vadd.f32 %v188, %v187
        %190 = vrot.lane.b32.xlu0 %v189, 127
        %v191 = vpop.permute.xlu0 %190
        %v192 = vsel %vm162, 1, 0
        %vm193 = vcmp.eq.s32.totalorder %v192, 1
        %v194 = vsel %vm193, %v191, 0.0
        %195 = vrot.lane.b32.xlu0 %v189, 1
        %v196 = vpop.permute.xlu0 %195
        %v197 = vsel %vm161, 1, 0
        %vm198 = vcmp.eq.s32.totalorder %v197, 1
        %v199 = vsel %vm198, %v196, 0.0
        %v200 = vsub.f32 %v194, %v199
        %v201 = vmul.f32 %v200, %v200
        %202 = vrot.lane.b32.xlu0 %v132, 1
        %v203 = vpop.permute.xlu0 %202
        %v204 = vsel %vm198, %v203, 0.0
        %v205 = vadd.f32 %v204, %v177
        %206 = vrot.lane.b32.xlu0 %v132, 127
        %v207 = vpop.permute.xlu0 %206
        %v208 = vsel %vm193, %v207, 0.0
        %v209 = vadd.f32 %v205, %v208
        %210 = vrot.lane.b32.xlu0 %v209, 16
        %v211 = vpop.permute.xlu0 %210
        %v212 = vrot.slane %v211, 7
        %v213 = vsel %vm168, %v211, %v212
        %v214 = vsel %vm169, %v213, 0.0
        %215 = vrot.lane.b32.xlu0 %v209, 112
        %v216 = vpop.permute.xlu0 %215
        %v217 = vrot.slane %v216, 1
        %v218 = vsel %vm175, %v216, %v217
        %v219 = vsel %vm176, %v218, 0.0
        %v220 = vsub.f32 %v214, %v219
        %v221 = vmul.f32 %v220, %v220
        %v222 = vadd.f32 %v201, %v221
        %v223 = vadd.f32 %v222, 1e-08
        %v224 = vrsqrt.pop %v223
        %v225 = vmul.f32 %v223, %v224
        %vm226 = vcmp.eq.f32.partialorder %v223, inf
        %v227 = vsel %vm226, %v223, %v225
        %vm228 = vcmp.eq.f32.partialorder %v223, 0.0
        %v229 = vand.u32 %v223, 2147483648
        %v230 = vsel %vm228, %v229, %v227
        %231 = vst [vmem:[%s131] sm:$0xff] %v230
        %s232 = sand.u32 %s52, 1
        %s233 = scalar_lea.sflag [#allocation4], %s232
        %s234 = sand.u32 %s52, 1
        %s235 = smul.addr %s234, 8
        %s236 = scalar_lea.vmem [#allocation5], %s235
        // Predicated region
        $region29: #{tpu_custom_call.1} parent=23 // pred_check
          %p237 = pneg %p62
        $region30: #{tpu_custom_call.1} parent=23 // pred_check_branch
          %239 = sbr.rel (%p237) target = $region32
        $region31: #{tpu_custom_call.1} parent=23 // pred_region
          %s241 = ssub.s32 128, 128
          %242 = vsyncadd %s233, %s241
          %s243 = smul.addr %s18, 128
          %s244 = scalar_lea.hbm %s1, %s243
          %s246 = sshll.u32 %s236, 4
          %s247 = int_to_ptr.vmem [resolvable:$true] %s246
          %249 = dma.vmem_to_hbm [thread:$0]  %s247, 128, %s244, %s233
        $region32: #{tpu_custom_call.1} parent=23 // pred_fallthru
          _
      $region24: #{tpu_custom_call.1} parent=5 // pred_fallthru
        _
      %p250 = scmp.le.s32.totalorder 2, %s13
      // Predicated region
      $region33: #{tpu_custom_call.1} parent=5 // pred_check
        %p251 = pneg %p250
      $region34: #{tpu_custom_call.1} parent=5 // pred_check_branch
        %253 = sbr.rel (%p251) target = $region36
      $region35: #{tpu_custom_call.1} parent=5 // pred_region
        %s254 = ssub.s32 %s13, 2
        // Predicated region
        $region37: #{tpu_custom_call.1} parent=35 // pred_check
          %p255 = pneg %p68
        $region38: #{tpu_custom_call.1} parent=35 // pred_check_branch
          %257 = sbr.rel (%p255) target = $region40
        $region39: #{tpu_custom_call.1} parent=35 // pred_region
          %s258 = sand.u32 %s53, 1
          %s259 = scalar_lea.sflag [#allocation4], %s258
          %s260 = sand.u32 %s53, 1
          %s261 = smul.addr %s260, 8
          %s262 = scalar_lea.vmem [#allocation5], %s261
          %263 = dma.done %s259, 128
        $region40: #{tpu_custom_call.1} parent=35 // pred_fallthru
          _
      $region36: #{tpu_custom_call.1} parent=5 // pred_fallthru
        _
    $region6: #{tpu_custom_call.1} parent=1 // loop_footer
      %s17 = sadd.s32 1, %s13
    $region7: #{tpu_custom_call.1} parent=1 // loop_footer_branch
      %12 = sbr.rel target = $region3
    $region8: #{tpu_custom_call.1} parent=1 // loop_exit
      _
    %264 = vsyncpa [#allocation3], 1
    %s265 = scalar_lea.sflag [#allocation3], 1
    %266 = vsyncpa %s265, 1
    %267 = vsyncpa [#allocation4], 1
    %s268 = scalar_lea.sflag [#allocation4], 1
    %269 = vsyncpa %s268, 1

</llo_original>
